<compile_context>
chip_gen: v6e
topology: v6e:2x2x1
jax: 0.10.0
libtpu: 0.0.40
codegen_flags: <defaults>
</compile_context>

<pallas_src>
import jax
import jax.numpy as jnp
from jax.experimental import pallas as pl
from jax.experimental.pallas import tpu as pltpu


_SELECT_MAX_ORGS = 8  # use the VPU select chain up to this many rows


def _embed_kernel(idx_ref, table_ref, out_ref):
    # idx_ref:   (tm, 1)            int32 organism ids for this tile
    # table_ref: (num_orgs, e_dim)  full embedding table (VMEM resident)
    # out_ref:   (tm, e_dim)
    idx = idx_ref[...]                                   # (tm, 1)
    num_orgs, e_dim = table_ref.shape
    tm = out_ref.shape[0]

    if num_orgs <= _SELECT_MAX_ORGS:
        # Pure-VPU select chain: no one-hot materialization, no MXU round trip,
        # output stays in the table's native dtype. Out-of-range ids -> zeros
        # (same as the previous one-hot behavior).
        result = jnp.zeros((tm, e_dim), dtype=out_ref.dtype)
        for i in range(num_orgs):
            row = table_ref[pl.ds(i, 1), :]              # (1, e_dim)
            result = jnp.where(idx == i, row, result)    # broadcast to (tm, e_dim)
        out_ref[...] = result
    else:
        # Fallback for large vocab: one-hot gather on the MXU.
        iota = jax.lax.broadcasted_iota(jnp.int32, (tm, num_orgs), 1)
        one_hot = (iota == idx).astype(table_ref.dtype)
        out_ref[...] = jnp.dot(
            one_hot, table_ref[...], preferred_element_type=jnp.float32
        ).astype(out_ref.dtype)


def _round_up(n, m):
    return ((n + m - 1) // m) * m


def organism_embedding(x, table, *, tm=None):
    """Pallas equivalent of nn.Embedding(table)(x)."""
    orig_shape = x.shape
    num_orgs, e_dim = table.shape
    itemsize = jnp.dtype(table.dtype).itemsize

    idx = x.reshape(-1).astype(jnp.int32)
    T = idx.shape[0]
    idx2d = idx.reshape(T, 1)

    # Sublane alignment of the output tile (packed dtypes want taller tiles).
    align = {4: 8, 2: 16, 1: 32}.get(itemsize, 8)

    if tm is None:
        # This kernel is HBM-bandwidth bound, so make tiles big, but:
        #  - keep >= 2 grid steps so the parallel axis can shard across v7x's
        #    two TensorCores,
        #  - cap the double-buffered output tile well under v7x's smaller VMEM.
        vmem_budget = 16 * 1024 * 1024  # bytes allowed for 2x output buffers
        tm_vmem_cap = max(align, (vmem_budget // (2 * e_dim * itemsize)) // align * align)
        tm = min(1024, _round_up(pl.cdiv(T, 2), align), tm_vmem_cap)
        tm = max(tm, align)

    grid = (pl.cdiv(T, tm),)  # Pallas masks the partial last block; no pad/slice

    cost = pl.CostEstimate(
        flops=0,
        transcendentals=0,
        bytes_accessed=T * 4 + T * e_dim * itemsize + num_orgs * e_dim * itemsize,
    )

    out = pl.pallas_call(
        _embed_kernel,
        out_shape=jax.ShapeDtypeStruct((T, e_dim), table.dtype),
        grid_spec=pltpu.PrefetchScalarGridSpec(
            num_scalar_prefetch=0,
            grid=grid,
            in_specs=[
                pl.BlockSpec((tm, 1), lambda i: (i, 0)),            # id tile
                pl.BlockSpec((num_orgs, e_dim), lambda i: (0, 0)),  # full table
            ],
            out_specs=pl.BlockSpec((tm, e_dim), lambda i: (i, 0)),
        ),
        compiler_params=pltpu.CompilerParams(
            dimension_semantics=("parallel",),
        ),
        cost_estimate=cost,
    )(idx2d, table)

    return out.reshape(*orig_shape, e_dim)


if __name__ == "__main__":
    # Small shapes consistent with the module: num_orgs=4, e_dim=512 (defaults),
    # x = batch of organism ids with shape (2, 8).
    num_orgs, e_dim = 4, 512
    key = jax.random.PRNGKey(0)
    k_table, k_idx = jax.random.split(key)

    # Deterministic synthetic "pretrained" embedding table (module uses randn).
    table = jax.random.normal(k_table, (num_orgs, e_dim), dtype=jnp.float32)
    x = jax.random.randint(k_idx, (2, 8), 0, num_orgs, dtype=jnp.int32)

    out = jax.block_until_ready(organism_embedding(x, table))

    # Reference: plain JAX gather (== PyTorch nn.Embedding semantics).
    ref = table[x]
    assert out.shape == (2, 8, e_dim), out.shape
    assert out.dtype == table.dtype
    assert jnp.allclose(out, ref), "mismatch vs reference gather"
    print("KERNEL_OK")
</pallas_src>

<mosaic_0001>
module attributes {stable_mosaic.version = 11 : i64} {
  func.func @_embed_kernel(%arg0: i32, %arg1: memref<8x1xi32, #tpu.memory_space<vmem>>, %arg2: memref<4x512xf32, #tpu.memory_space<vmem>>, %arg3: memref<8x512xf32, #tpu.memory_space<vmem>>) attributes {dimension_semantics = [#tpu.dimension_semantics<parallel>], iteration_bounds = array<i64: 2>, scalar_prefetch = 0 : i64, scratch_operands = 0 : i64, tpu.core_type = #tpu.core_type<tc>, window_params = [{transform_indices = @transform_0, window_bounds = array<i64: 8, 1>}, {pipeline_mode = #tpu.pipeline_mode<synchronous>, transform_indices = @transform_1, window_bounds = array<i64: 4, 512>}, {transform_indices = @transform_2, window_bounds = array<i64: 8, 512>}]} {
    %c0 = arith.constant 0 : index
    %c0_0 = arith.constant 0 : index
    %0 = vector.load %arg1[%c0, %c0_0] : memref<8x1xi32, #tpu.memory_space<vmem>>, vector<8x1xi32>
    %cst = arith.constant 0.000000e+00 : f32
    %1 = vector.broadcast %cst : f32 to vector<8x512xf32>
    %c0_1 = arith.constant 0 : index
    %c0_2 = arith.constant 0 : index
    %2 = vector.load %arg2[%c0_1, %c0_2] : memref<4x512xf32, #tpu.memory_space<vmem>>, vector<1x512xf32>
    %c0_i32 = arith.constant 0 : i32
    %3 = vector.broadcast %c0_i32 : i32 to vector<8x1xi32>
    %4 = arith.cmpi eq, %0, %3 : vector<8x1xi32>
    %5 = vector.shape_cast %4 : vector<8x1xi1> to vector<8x1xi1>
    %6 = vector.broadcast %5 : vector<8x1xi1> to vector<8x512xi1>
    %7 = vector.shape_cast %2 : vector<1x512xf32> to vector<1x512xf32>
    %8 = vector.broadcast %7 : vector<1x512xf32> to vector<8x512xf32>
    %9 = arith.select %6, %8, %1 : vector<8x512xi1>, vector<8x512xf32>
    %c1 = arith.constant 1 : index
    %c0_3 = arith.constant 0 : index
    %10 = vector.load %arg2[%c1, %c0_3] : memref<4x512xf32, #tpu.memory_space<vmem>>, vector<1x512xf32>
    %c1_i32 = arith.constant 1 : i32
    %11 = vector.broadcast %c1_i32 : i32 to vector<8x1xi32>
    %12 = arith.cmpi eq, %0, %11 : vector<8x1xi32>
    %13 = vector.shape_cast %12 : vector<8x1xi1> to vector<8x1xi1>
    %14 = vector.broadcast %13 : vector<8x1xi1> to vector<8x512xi1>
    %15 = vector.shape_cast %10 : vector<1x512xf32> to vector<1x512xf32>
    %16 = vector.broadcast %15 : vector<1x512xf32> to vector<8x512xf32>
    %17 = arith.select %14, %16, %9 : vector<8x512xi1>, vector<8x512xf32>
    %c2 = arith.constant 2 : index
    %c0_4 = arith.constant 0 : index
    %18 = vector.load %arg2[%c2, %c0_4] : memref<4x512xf32, #tpu.memory_space<vmem>>, vector<1x512xf32>
    %c2_i32 = arith.constant 2 : i32
    %19 = vector.broadcast %c2_i32 : i32 to vector<8x1xi32>
    %20 = arith.cmpi eq, %0, %19 : vector<8x1xi32>
    %21 = vector.shape_cast %20 : vector<8x1xi1> to vector<8x1xi1>
    %22 = vector.broadcast %21 : vector<8x1xi1> to vector<8x512xi1>
    %23 = vector.shape_cast %18 : vector<1x512xf32> to vector<1x512xf32>
    %24 = vector.broadcast %23 : vector<1x512xf32> to vector<8x512xf32>
    %25 = arith.select %22, %24, %17 : vector<8x512xi1>, vector<8x512xf32>
    %c3 = arith.constant 3 : index
    %c0_5 = arith.constant 0 : index
    %26 = vector.load %arg2[%c3, %c0_5] : memref<4x512xf32, #tpu.memory_space<vmem>>, vector<1x512xf32>
    %c3_i32 = arith.constant 3 : i32
    %27 = vector.broadcast %c3_i32 : i32 to vector<8x1xi32>
    %28 = arith.cmpi eq, %0, %27 : vector<8x1xi32>
    %29 = vector.shape_cast %28 : vector<8x1xi1> to vector<8x1xi1>
    %30 = vector.broadcast %29 : vector<8x1xi1> to vector<8x512xi1>
    %31 = vector.shape_cast %26 : vector<1x512xf32> to vector<1x512xf32>
    %32 = vector.broadcast %31 : vector<1x512xf32> to vector<8x512xf32>
    %33 = arith.select %30, %32, %25 : vector<8x512xi1>, vector<8x512xf32>
    %c0_6 = arith.constant 0 : index
    %c0_7 = arith.constant 0 : index
    %34 = vector.load %arg3[%c0_6, %c0_7] : memref<8x512xf32, #tpu.memory_space<vmem>>, vector<8x512xf32>
    tpu.vector_store %arg3[%c0_6, %c0_7], %33 {strides = array<i32>} : memref<8x512xf32, #tpu.memory_space<vmem>>, vector<8x512xf32>,
    return
  }
  func.func @transform_0(%arg0: i32) -> (i32, i32) {
    %c0_i32 = arith.constant 0 : i32
    %c0_i32_0 = arith.constant 0 : i32
    return %arg0, %c0_i32 : i32, i32
  }
  func.func @transform_1(%arg0: i32) -> (i32, i32) {
    %c0_i32 = arith.constant 0 : i32
    %c0_i32_0 = arith.constant 0 : i32
    %c0_i32_1 = arith.constant 0 : i32
    return %c0_i32, %c0_i32_0 : i32, i32
  }
  func.func @transform_2(%arg0: i32) -> (i32, i32) {
    %c0_i32 = arith.constant 0 : i32
    %c0_i32_0 = arith.constant 0 : i32
    return %arg0, %c0_i32 : i32, i32
  }
}

</mosaic_0001>

<llo_original>
// kernel: tpu_custom_call.1
$region0: #{tpu_custom_call.1}
  #allocation0 [shape = 'u32[]', space=smem, size = 0x4, offset = 0x4, fixed_abs, tag = 'smem constant byte address 0x4 - core index']
  #allocation1 [shape = 'u32[144,128]{1,0:T(1,128)}', space=vmem, size = 0x12000, scoped, tag = 'internal scratch']
  %s0 = inlined_call_operand.vmem [shape: s32[16,1], index: 0, kind: input, shape index: {}]
  %s1 = inlined_call_operand.vmem [shape: f32[4,512], index: 1, kind: input, shape index: {}]
  %s2 = inlined_call_operand.hbm [shape: f32[16,512], index: 2, kind: output, shape index: {}]
  %s3 = sld [smem:[#allocation0]]
  $region41: #{tpu_custom_call.1} parent=0
    _
  %s5 = ssub.s32 1, %s3
  %s6 = scalar_select 0, %s5, %s3
  $region1: #{tpu_custom_call.1} parent=0
    #allocation2 [shape = 'u8[32768]{0}', space=vmem, size = 0x8000, scoped, tag = 'output window, operand 0']
    #allocation3 [shape = 's32[2]{0}', space=sflag, size = 0x8, scoped, tag = 'scoped memory for tpu_custom_call.1']
    %7 = vsyncpa [#allocation3], 0
    %s8 = scalar_lea.sflag [#allocation3], 1
    %9 = vsyncpa %s8, 0
    loop: start=0, step=1, limit=4
    $region2: #{tpu_custom_call.1} parent=1 // loop_pre_header
      _
    $region3: #{tpu_custom_call.1} parent=1 // loop_header
      %s11 = sphi 0, %s15
      %p12 = scmp.ge.s32.totalorder %s11, 4
      %s21 = sphi 0, %s23
      %s24 = sphi 0, %s21
      %s25 = sphi 0, %s24
      %s41 = sphi 0, %s25
      %s45 = sphi 0, %s45
      %s47 = sphi 0, %s45
      %s48 = sphi 0, %s47
      %s62 = sphi 0, %s48
      %s68 = sphi 0, %s70
      %s71 = sphi 0, %s68
      %s72 = sphi 0, %s71
      %s88 = sphi 0, %s72
    $region4: #{tpu_custom_call.1} parent=1 // loop_header_branch
      %14 = sbr.rel (%p12) target = $region8
    $region5: #{tpu_custom_call.1} parent=1 // loop_body
      %s16 = ssub.s32 %s11, 1
      %s17 = ssub.s32 %s11, 2
      %s18 = sadd.s32 %s11, 1
      %s19 = ssub.s32 %s11, %s18
      %p20 = scmp.eq.s32.totalorder %s19, 0
      %s22 = sadd.s32 %s21, 1
      %s23 = scalar_select %p20, %s21, %s22
      %p26 = pneg %p20
      %p27 = scmp.eq.s32.totalorder %s11, 1
      %p28 = por %p26, %p27
      %p29 = scmp.ne.s32.totalorder %s21, %s24
      %p30 = scmp.eq.s32.totalorder %s11, 0
      %p31 = por %p29, %p30
      %p32 = scmp.ne.s32.totalorder %s21, %s24
      %p33 = scmp.eq.s32.totalorder %s16, 1
      %p34 = por %p32, %p33
      %p35 = scmp.ne.s32.totalorder %s24, %s25
      %p36 = scmp.eq.s32.totalorder %s16, 0
      %p37 = por %p35, %p36
      %p38 = scmp.ne.s32.totalorder %s24, %s25
      %p39 = scmp.eq.s32.totalorder %s17, 1
      %p40 = por %p38, %p39
      %p42 = scmp.ne.s32.totalorder %s25, %s41
      %p43 = scmp.eq.s32.totalorder %s17, 0
      %p44 = por %p42, %p43
      %s46 = sadd.s32 %s45, 1
      %p49 = scmp.eq.s32.totalorder %s11, 1
      %p50 = scmp.ne.s32.totalorder %s45, %s47
      %p51 = scmp.eq.s32.totalorder %s11, 0
      %p52 = por %p50, %p51
      %p53 = scmp.ne.s32.totalorder %s45, %s47
      %p54 = scmp.eq.s32.totalorder %s16, 1
      %p55 = por %p53, %p54
      %p56 = scmp.ne.s32.totalorder %s47, %s48
      %p57 = scmp.eq.s32.totalorder %s16, 0
      %p58 = por %p56, %p57
      %p59 = scmp.ne.s32.totalorder %s47, %s48
      %p60 = scmp.eq.s32.totalorder %s17, 1
      %p61 = por %p59, %p60
      %p63 = scmp.ne.s32.totalorder %s48, %s62
      %p64 = scmp.eq.s32.totalorder %s17, 0
      %p65 = por %p63, %p64
      %s66 = ssub.s32 %s11, %s18
      %p67 = scmp.eq.s32.totalorder %s66, 0
      %s69 = sadd.s32 %s68, 1
      %s70 = scalar_select %p67, %s68, %s69
      %p73 = pneg %p67
      %p74 = scmp.eq.s32.totalorder %s11, 1
      %p75 = por %p73, %p74
      %p76 = scmp.ne.s32.totalorder %s68, %s71
      %p77 = scmp.eq.s32.totalorder %s11, 0
      %p78 = por %p76, %p77
      %p79 = scmp.ne.s32.totalorder %s68, %s71
      %p80 = scmp.eq.s32.totalorder %s16, 1
      %p81 = por %p79, %p80
      %p82 = scmp.ne.s32.totalorder %s71, %s72
      %p83 = scmp.eq.s32.totalorder %s16, 0
      %p84 = por %p82, %p83
      %p85 = scmp.ne.s32.totalorder %s71, %s72
      %p86 = scmp.eq.s32.totalorder %s17, 1
      %p87 = por %p85, %p86
      %p89 = scmp.ne.s32.totalorder %s72, %s88
      %p90 = scmp.eq.s32.totalorder %s17, 0
      %p91 = por %p89, %p90
      %p92 = scmp.le.s32.totalorder 1, %s11
      %p93 = scmp.lt.s32.totalorder %s11, 3
      %p94 = pnand %p92, %p93
      %p95 = pneg %p94
      // Predicated region
      $region9: #{tpu_custom_call.1} parent=5 // pred_check
        _
      $region10: #{tpu_custom_call.1} parent=5 // pred_check_branch
        %97 = sbr.rel (%p94) target = $region12
      $region11: #{tpu_custom_call.1} parent=5 // pred_region
        %s98 = ssub.s32 %s11, 1
        // Predicated region
        $region13: #{tpu_custom_call.1} parent=11 // pred_check
          %p99 = pneg %p58
        $region14: #{tpu_custom_call.1} parent=11 // pred_check_branch
          %101 = sbr.rel (%p99) target = $region16
        $region15: #{tpu_custom_call.1} parent=11 // pred_region
          _
        $region16: #{tpu_custom_call.1} parent=11 // pred_fallthru
          _
      $region12: #{tpu_custom_call.1} parent=5 // pred_fallthru
        _
      %p102 = scmp.lt.s32.totalorder %s11, 2
      // Predicated region
      $region17: #{tpu_custom_call.1} parent=5 // pred_check
        %p103 = pneg %p102
      $region18: #{tpu_custom_call.1} parent=5 // pred_check_branch
        %105 = sbr.rel (%p103) target = $region20
      $region19: #{tpu_custom_call.1} parent=5 // pred_region
        // Predicated region
        $region21: #{tpu_custom_call.1} parent=19 // pred_check
          %p106 = pneg %p31
        $region22: #{tpu_custom_call.1} parent=19 // pred_check_branch
          %108 = sbr.rel (%p106) target = $region24
        $region23: #{tpu_custom_call.1} parent=19 // pred_region
          %p109 = scmp.lt.s32.totalorder %s11, 1
          %s110 = scalar_select %p109, %s11, 1
          %s111 = smul.addr %s110, 8
          %s112 = scalar_lea.vmem %s0, %s111
        $region24: #{tpu_custom_call.1} parent=19 // pred_fallthru
          _
      $region20: #{tpu_custom_call.1} parent=5 // pred_fallthru
        _
      %p113 = scmp.le.s32.totalorder 1, %s11
      %p114 = scmp.lt.s32.totalorder %s11, 3
      %p115 = pnand %p113, %p114
      %p116 = pneg %p115
      // Predicated region
      $region25: #{tpu_custom_call.1} parent=5 // pred_check
        _
      $region26: #{tpu_custom_call.1} parent=5 // pred_check_branch
        %118 = sbr.rel (%p115) target = $region28
      $region27: #{tpu_custom_call.1} parent=5 // pred_region
        %s119 = ssub.s32 %s11, 1
        %p120 = scmp.lt.s32.totalorder %s16, 1
        %s121 = scalar_select %p120, %s16, 1
        %s122 = smul.addr %s121, 8
        %s123 = scalar_lea.vmem %s0, %s122
        %p124 = pneg %p37
        %p125 = pneg %p34
        %p126 = pneg %p58
        %p127 = pneg %p55
        %p128 = pneg %p84
        %p129 = pneg %p81
        %s130 = sand.u32 %s71, 1
        %s131 = scalar_lea.sflag [#allocation3], %s130
        %s132 = sand.u32 %s71, 1
        %s133 = smul.addr %s132, 32
        %s134 = scalar_lea.vmem [#allocation2], %s133
        %p135 = scmp.lt.s32.totalorder %s16, 1
        %s136 = scalar_select %p135, %s16, 1
        %s137 = smul.addr %s136, 8
        %s138 = scalar_lea.vmem %s0, %s137
        %v139 = vld [vmem:[%s138] sm:$0xff]
        %v140 = vld [vmem:[%s1] ss:$4 sm:$0xf]
        %vm141 = vcmp.eq.s32.totalorder %v139, 0
        %v142 = vsel %vm141, 1, 0
        %143 = vset.pattern.permute.xlu0 0
        %144 = vperm.xlu0 %143, %v142
        %v145 = vpop.permute.xlu0 %144
        %vm146 = vcmp.eq.s32.totalorder %v145, 1
        %v148 = vlaneseq
        %v149 = vshrl.u32 %v148, 7
        %v150 = vsub.s32 0, %v149
        %v151 = vrot.slane %v140, %v150
        %v152 = vlaneseq
        %v153 = vshrl.u32 %v152, 7
        %v154 = vsub.s32 1, %v153
        %v155 = vrot.slane %v140, %v154
        %v156 = vlaneseq
        %v157 = vshrl.u32 %v156, 7
        %v158 = vsub.s32 2, %v157
        %v159 = vrot.slane %v140, %v158
        %v160 = vlaneseq
        %v161 = vshrl.u32 %v160, 7
        %v162 = vsub.s32 3, %v161
        %v163 = vrot.slane %v140, %v162
        %v168 = vsel %vm146, %v151, 0.0
        %v169 = vsel %vm146, %v155, 0.0
        %v170 = vsel %vm146, %v159, 0.0
        %v171 = vsel %vm146, %v163, 0.0
        %s172 = scalar_lea.vmem %s1, 1
        %v173 = vld [vmem:[%s172] ss:$4 sm:$0xf]
        %vm174 = vcmp.eq.s32.totalorder %v139, 1
        %v175 = vsel %vm174, 1, 0
        %176 = vset.pattern.permute.xlu0 0
        %177 = vperm.xlu0 %176, %v175
        %v178 = vpop.permute.xlu0 %177
        %vm179 = vcmp.eq.s32.totalorder %v178, 1
        %v181 = vlaneseq
        %v182 = vshrl.u32 %v181, 7
        %v183 = vsub.s32 0, %v182
        %v184 = vrot.slane %v173, %v183
        %v185 = vlaneseq
        %v186 = vshrl.u32 %v185, 7
        %v187 = vsub.s32 1, %v186
        %v188 = vrot.slane %v173, %v187
        %v189 = vlaneseq
        %v190 = vshrl.u32 %v189, 7
        %v191 = vsub.s32 2, %v190
        %v192 = vrot.slane %v173, %v191
        %v193 = vlaneseq
        %v194 = vshrl.u32 %v193, 7
        %v195 = vsub.s32 3, %v194
        %v196 = vrot.slane %v173, %v195
        %v201 = vsel %vm179, %v184, %v168
        %v202 = vsel %vm179, %v188, %v169
        %v203 = vsel %vm179, %v192, %v170
        %v204 = vsel %vm179, %v196, %v171
        %s205 = scalar_lea.vmem %s1, 2
        %v206 = vld [vmem:[%s205] ss:$4 sm:$0xf]
        %vm207 = vcmp.eq.s32.totalorder %v139, 2
        %v208 = vsel %vm207, 1, 0
        %209 = vset.pattern.permute.xlu0 0
        %210 = vperm.xlu0 %209, %v208
        %v211 = vpop.permute.xlu0 %210
        %vm212 = vcmp.eq.s32.totalorder %v211, 1
        %v214 = vlaneseq
        %v215 = vshrl.u32 %v214, 7
        %v216 = vsub.s32 0, %v215
        %v217 = vrot.slane %v206, %v216
        %v218 = vlaneseq
        %v219 = vshrl.u32 %v218, 7
        %v220 = vsub.s32 1, %v219
        %v221 = vrot.slane %v206, %v220
        %v222 = vlaneseq
        %v223 = vshrl.u32 %v222, 7
        %v224 = vsub.s32 2, %v223
        %v225 = vrot.slane %v206, %v224
        %v226 = vlaneseq
        %v227 = vshrl.u32 %v226, 7
        %v228 = vsub.s32 3, %v227
        %v229 = vrot.slane %v206, %v228
        %v234 = vsel %vm212, %v217, %v201
        %v235 = vsel %vm212, %v221, %v202
        %v236 = vsel %vm212, %v225, %v203
        %v237 = vsel %vm212, %v229, %v204
        %s238 = scalar_lea.vmem %s1, 3
        %v239 = vld [vmem:[%s238] ss:$4 sm:$0xf]
        %vm240 = vcmp.eq.s32.totalorder %v139, 3
        %v241 = vsel %vm240, 1, 0
        %242 = vset.pattern.permute.xlu0 0
        %243 = vperm.xlu0 %242, %v241
        %v244 = vpop.permute.xlu0 %243
        %vm245 = vcmp.eq.s32.totalorder %v244, 1
        %v247 = vlaneseq
        %v248 = vshrl.u32 %v247, 7
        %v249 = vsub.s32 0, %v248
        %v250 = vrot.slane %v239, %v249
        %v251 = vlaneseq
        %v252 = vshrl.u32 %v251, 7
        %v253 = vsub.s32 1, %v252
        %v254 = vrot.slane %v239, %v253
        %v255 = vlaneseq
        %v256 = vshrl.u32 %v255, 7
        %v257 = vsub.s32 2, %v256
        %v258 = vrot.slane %v239, %v257
        %v259 = vlaneseq
        %v260 = vshrl.u32 %v259, 7
        %v261 = vsub.s32 3, %v260
        %v262 = vrot.slane %v239, %v261
        %v267 = vsel %vm245, %v250, %v234
        %v268 = vsel %vm245, %v254, %v235
        %v269 = vsel %vm245, %v258, %v236
        %v270 = vsel %vm245, %v262, %v237
        %271 = vst [vmem:[%s134] sm:$0xff] %v267
        %272 = vst [vmem:[%s134 + $0x8] sm:$0xff] %v268
        %273 = vst [vmem:[%s134 + $0x10] sm:$0xff] %v269
        %274 = vst [vmem:[%s134 + $0x18] sm:$0xff] %v270
        %s275 = sand.u32 %s71, 1
        %s276 = scalar_lea.sflag [#allocation3], %s275
        %s277 = sand.u32 %s71, 1
        %s278 = smul.addr %s277, 32
        %s279 = scalar_lea.vmem [#allocation2], %s278
        // Predicated region
        $region29: #{tpu_custom_call.1} parent=27 // pred_check
          %p280 = pneg %p81
        $region30: #{tpu_custom_call.1} parent=27 // pred_check_branch
          %282 = sbr.rel (%p280) target = $region32
        $region31: #{tpu_custom_call.1} parent=27 // pred_region
          %s284 = ssub.s32 512, 512
          %285 = vsyncadd %s276, %s284
          %s286 = smul.addr %s16, 4
          %s287 = smul.addr %s286, 128
          %s288 = scalar_lea.hbm %s2, %s287
          %s290 = sshll.u32 %s279, 4
          %s291 = int_to_ptr.vmem [resolvable:$true] %s290
          %293 = dma.vmem_to_hbm [thread:$0]  %s291, 512, %s288, %s276
        $region32: #{tpu_custom_call.1} parent=27 // pred_fallthru
          _
      $region28: #{tpu_custom_call.1} parent=5 // pred_fallthru
        _
      %p294 = scmp.le.s32.totalorder 2, %s11
      // Predicated region
      $region33: #{tpu_custom_call.1} parent=5 // pred_check
        %p295 = pneg %p294
      $region34: #{tpu_custom_call.1} parent=5 // pred_check_branch
        %297 = sbr.rel (%p295) target = $region36
      $region35: #{tpu_custom_call.1} parent=5 // pred_region
        %s298 = ssub.s32 %s11, 2
        // Predicated region
        $region37: #{tpu_custom_call.1} parent=35 // pred_check
          %p299 = pneg %p87
        $region38: #{tpu_custom_call.1} parent=35 // pred_check_branch
          %301 = sbr.rel (%p299) target = $region40
        $region39: #{tpu_custom_call.1} parent=35 // pred_region
          %s302 = sand.u32 %s72, 1
          %s303 = scalar_lea.sflag [#allocation3], %s302
          %s304 = sand.u32 %s72, 1
          %s305 = smul.addr %s304, 32
          %s306 = scalar_lea.vmem [#allocation2], %s305
          %307 = dma.done %s303, 512
        $region40: #{tpu_custom_call.1} parent=35 // pred_fallthru
          _
      $region36: #{tpu_custom_call.1} parent=5 // pred_fallthru
        _
    $region6: #{tpu_custom_call.1} parent=1 // loop_footer
      %s15 = sadd.s32 1, %s11
    $region7: #{tpu_custom_call.1} parent=1 // loop_footer_branch
      %10 = sbr.rel target = $region3
    $region8: #{tpu_custom_call.1} parent=1 // loop_exit
      _
    %308 = vsyncpa [#allocation3], 1
    %s309 = scalar_lea.sflag [#allocation3], 1
    %310 = vsyncpa %s309, 1

</llo_original>
